<compile_context>
chip_gen: v5e
topology: v5e:2x2
jax: 0.10.0
libtpu: 0.0.40
codegen_flags: <defaults>
</compile_context>

<pallas_src>
import functools

import jax
import jax.numpy as jnp
from jax.experimental import pallas as pl
from jax.experimental.pallas import tpu as pltpu


def lstm_seq_kernel(tok_ref,                 # SMEM: (T,) int32 token ids
                    emb_ref,                 # (V, 1, H)   embedding table (VMEM resident)
                    w_ref,                   # (L, 2H, 4H) fused [W_ih^T ; W_hh^T]
                    b_ref,                   # (L, 1, 4H)  fused bias b_ih + b_hh
                    w_fc_ref, b_fc_ref,      # (H, Opad), (1, Opad)
                    h0_ref, c0_ref,          # (L, 1, H)   initial state
                    logits_ref,              # (T, 1, Opad)
                    h_out_ref, c_out_ref,    # (L, 1, H)   VMEM-resident carry / final state
                    *, seq_len, num_layers, hidden):
    H = hidden

    # State starts from h0/c0 and stays resident in the output refs for all steps.
    h_out_ref[...] = h0_ref[...]
    c_out_ref[...] = c0_ref[...]

    @pl.loop(0, seq_len)
    def _(t):
        tok = tok_ref[t]                     # scalar read from SMEM
        x_t = emb_ref[tok]                   # (1, H) embedded token (dynamic row of VMEM table)

        # Static unroll over the (tiny) layer count.
        for l in range(num_layers):
            h_prev = h_out_ref[l]            # (1, H)
            c_prev = c_out_ref[l]            # (1, H)
            xh = jnp.concatenate([x_t, h_prev], axis=-1)              # (1, 2H)
            gates = (jnp.dot(xh, w_ref[l], preferred_element_type=jnp.float32)
                     + b_ref[l])                                      # (1, 4H), order i,f,g,o
            i_g = jax.nn.sigmoid(gates[:, 0:H])
            f_g = jax.nn.sigmoid(gates[:, H:2 * H])
            g_g = jnp.tanh(gates[:, 2 * H:3 * H])
            o_g = jax.nn.sigmoid(gates[:, 3 * H:4 * H])
            c_new = f_g * c_prev + i_g * g_g
            h_new = o_g * jnp.tanh(c_new)
            h_out_ref[l] = h_new
            c_out_ref[l] = c_new
            x_t = h_new                      # input to next layer

        logits_ref[t] = (jnp.dot(x_t, w_fc_ref[...], preferred_element_type=jnp.float32)
                         + b_fc_ref[...])    # (1, Opad), lane-dense store


def prepare_params(params):
    """One-time parameter preparation (hoisted out of the per-step path)."""
    num_layers, four_h, H = params["w_ih"].shape
    out_size = params["w_fc"].shape[0]
    out_pad = ((out_size + 127) // 128) * 128

    emb = params["emb"].reshape(-1, 1, H)                          # (V, 1, H) row gather
    w_cat = jnp.concatenate([jnp.transpose(params["w_ih"], (0, 2, 1)),
                             jnp.transpose(params["w_hh"], (0, 2, 1))],
                            axis=1)                                # (L, 2H, 4H)
    b_cat = (params["b_ih"] + params["b_hh"]).reshape(num_layers, 1, four_h)
    w_fc = jnp.zeros((H, out_pad), jnp.float32).at[:, :out_size].set(params["w_fc"].T)
    b_fc = jnp.zeros((1, out_pad), jnp.float32).at[0, :out_size].set(params["b_fc"])
    return {"emb": emb, "w_cat": w_cat, "b_cat": b_cat,
            "w_fc": w_fc, "b_fc": b_fc,
            "out_size": out_size, "out_pad": out_pad}


def lstm_forward(tokens, h0, c0, prep):
    """tokens: (T,) int32; h0, c0: (L, 1, H). Returns (logits (T, O), h_T, c_T).

    Each step t reproduces exactly one call of the PyTorch module's forward();
    T=1 is the literal single-character forward."""
    T = int(tokens.shape[0])
    num_layers, _, H = h0.shape
    out_pad = prep["out_pad"]

    vmem = pltpu.MemorySpace.VMEM
    smem = pltpu.MemorySpace.SMEM

    kernel = functools.partial(lstm_seq_kernel, seq_len=T,
                               num_layers=num_layers, hidden=H)
    logits_pad, h_out, c_out = pl.pallas_call(
        kernel,
        out_shape=(
            jax.ShapeDtypeStruct((T, 1, out_pad), jnp.float32),
            jax.ShapeDtypeStruct((num_layers, 1, H), jnp.float32),
            jax.ShapeDtypeStruct((num_layers, 1, H), jnp.float32),
        ),
        in_specs=[
            pl.BlockSpec(memory_space=smem),   # token ids (scalars)
            pl.BlockSpec(memory_space=vmem),   # embedding table
            pl.BlockSpec(memory_space=vmem),   # fused LSTM weights
            pl.BlockSpec(memory_space=vmem),   # fused LSTM bias
            pl.BlockSpec(memory_space=vmem),   # fc weight (padded)
            pl.BlockSpec(memory_space=vmem),   # fc bias (padded)
            pl.BlockSpec(memory_space=vmem),   # h0
            pl.BlockSpec(memory_space=vmem),   # c0
        ],
        out_specs=(
            pl.BlockSpec(memory_space=vmem),   # padded logits
            pl.BlockSpec(memory_space=vmem),   # h_T
            pl.BlockSpec(memory_space=vmem),   # c_T
        ),
    )(tokens, prep["emb"], prep["w_cat"], prep["b_cat"],
      prep["w_fc"], prep["b_fc"], h0, c0)

    logits = logits_pad[:, 0, :prep["out_size"]]
    return logits, h_out, c_out


def reference_sequence(tokens, h0, c0, params):
    """Pure-JAX reference: apply the PyTorch-equivalent forward once per token."""
    num_layers, _, H = h0.shape
    h, c = h0, c0
    all_logits = []
    for t in range(tokens.shape[0]):
        x_t = params["emb"][tokens[t]][None, :]
        h_new, c_new = [], []
        for l in range(num_layers):
            gates = (x_t @ params["w_ih"][l].T + params["b_ih"][l]
                     + h[l] @ params["w_hh"][l].T + params["b_hh"][l])
            i_g = jax.nn.sigmoid(gates[:, 0:H])
            f_g = jax.nn.sigmoid(gates[:, H:2 * H])
            g_g = jnp.tanh(gates[:, 2 * H:3 * H])
            o_g = jax.nn.sigmoid(gates[:, 3 * H:4 * H])
            c_l = f_g * c[l] + i_g * g_g
            h_l = o_g * jnp.tanh(c_l)
            h_new.append(h_l)
            c_new.append(c_l)
            x_t = h_l
        h, c = jnp.stack(h_new), jnp.stack(c_new)
        all_logits.append(x_t @ params["w_fc"].T + params["b_fc"])
    return jnp.concatenate(all_logits, axis=0), h, c


if __name__ == "__main__":
    # Shapes implied by the module: vocab = len(string.printable) = 100,
    # hidden_size = 32, num_layers = 2, output_size = 100.
    vocab, hidden, num_layers, out_size = 100, 32, 2, 100
    T = 8                                      # small character sequence

    key = jax.random.PRNGKey(0)
    ks = jax.random.split(key, 8)
    bound = 1.0 / float(hidden) ** 0.5
    params = {
        "emb": jax.random.normal(ks[0], (vocab, hidden), jnp.float32),
        "w_ih": jax.random.uniform(ks[1], (num_layers, 4 * hidden, hidden),
                                   jnp.float32, -bound, bound),
        "w_hh": jax.random.uniform(ks[2], (num_layers, 4 * hidden, hidden),
                                   jnp.float32, -bound, bound),
        "b_ih": jax.random.uniform(ks[3], (num_layers, 4 * hidden),
                                   jnp.float32, -bound, bound),
        "b_hh": jax.random.uniform(ks[4], (num_layers, 4 * hidden),
                                   jnp.float32, -bound, bound),
        "w_fc": jax.random.uniform(ks[5], (out_size, hidden),
                                   jnp.float32, -bound, bound),
        "b_fc": jax.random.uniform(ks[6], (out_size,), jnp.float32, -bound, bound),
    }

    tokens = jax.random.randint(ks[7], (T,), 0, vocab, dtype=jnp.int32)
    h0 = jnp.zeros((num_layers, 1, hidden), jnp.float32)   # init_hidden(batch=1)
    c0 = jnp.zeros((num_layers, 1, hidden), jnp.float32)

    prep = prepare_params(params)               # one-time layout prep (hoisted)

    # Multi-step run: the whole per-character recurrence inside one pallas_call.
    logits, h1, c1 = lstm_forward(tokens, h0, c0, prep)
    jax.block_until_ready((logits, h1, c1))

    ref_logits, ref_h, ref_c = reference_sequence(tokens, h0, c0, params)
    assert jnp.allclose(logits, ref_logits, atol=1e-4, rtol=1e-4)
    assert jnp.allclose(h1, ref_h, atol=1e-4, rtol=1e-4)
    assert jnp.allclose(c1, ref_c, atol=1e-4, rtol=1e-4)

    # Single-token run: exactly the original module's forward(x, hidden, cell).
    x1 = tokens[:1]
    l1, h1s, c1s = lstm_forward(x1, h0, c0, prep)
    rl1, rh1, rc1 = reference_sequence(x1, h0, c0, params)
    assert l1.shape == (1, out_size)
    assert jnp.allclose(l1, rl1, atol=1e-4, rtol=1e-4)
    assert jnp.allclose(h1s, rh1, atol=1e-4, rtol=1e-4)
    assert jnp.allclose(c1s, rc1, atol=1e-4, rtol=1e-4)

    print("KERNEL_OK")
</pallas_src>

<mosaic_0001>
module attributes {stable_mosaic.version = 11 : i64} {
  func.func @lstm_seq_kernel(%arg0: memref<8xi32, #tpu.memory_space<smem>>, %arg1: memref<100x1x32xf32, #tpu.memory_space<vmem>>, %arg2: memref<2x64x128xf32, #tpu.memory_space<vmem>>, %arg3: memref<2x1x128xf32, #tpu.memory_space<vmem>>, %arg4: memref<32x128xf32, #tpu.memory_space<vmem>>, %arg5: memref<1x128xf32, #tpu.memory_space<vmem>>, %arg6: memref<2x1x32xf32, #tpu.memory_space<vmem>>, %arg7: memref<2x1x32xf32, #tpu.memory_space<vmem>>, %arg8: memref<8x1x128xf32, #tpu.memory_space<vmem>>, %arg9: memref<2x1x32xf32, #tpu.memory_space<vmem>>, %arg10: memref<2x1x32xf32, #tpu.memory_space<vmem>>) attributes {dimension_semantics = [], scalar_prefetch = 0 : i64, scratch_operands = 0 : i64, tpu.core_type = #tpu.core_type<tc>} {
    %c0 = arith.constant 0 : index
    %c0_0 = arith.constant 0 : index
    %c0_1 = arith.constant 0 : index
    %0 = vector.load %arg6[%c0, %c0_0, %c0_1] : memref<2x1x32xf32, #tpu.memory_space<vmem>>, vector<2x1x32xf32>
    %c0_2 = arith.constant 0 : index
    %c0_3 = arith.constant 0 : index
    %c0_4 = arith.constant 0 : index
    %1 = vector.load %arg9[%c0_2, %c0_3, %c0_4] : memref<2x1x32xf32, #tpu.memory_space<vmem>>, vector<2x1x32xf32>
    tpu.vector_store %arg9[%c0_2, %c0_3, %c0_4], %0 {strides = array<i32>} : memref<2x1x32xf32, #tpu.memory_space<vmem>>, vector<2x1x32xf32>,
    %c0_5 = arith.constant 0 : index
    %c0_6 = arith.constant 0 : index
    %c0_7 = arith.constant 0 : index
    %2 = vector.load %arg7[%c0_5, %c0_6, %c0_7] : memref<2x1x32xf32, #tpu.memory_space<vmem>>, vector<2x1x32xf32>
    %c0_8 = arith.constant 0 : index
    %c0_9 = arith.constant 0 : index
    %c0_10 = arith.constant 0 : index
    %3 = vector.load %arg10[%c0_8, %c0_9, %c0_10] : memref<2x1x32xf32, #tpu.memory_space<vmem>>, vector<2x1x32xf32>
    tpu.vector_store %arg10[%c0_8, %c0_9, %c0_10], %2 {strides = array<i32>} : memref<2x1x32xf32, #tpu.memory_space<vmem>>, vector<2x1x32xf32>,
    %c0_i32 = arith.constant 0 : i32
    %c8_i32 = arith.constant 8 : i32
    %4 = arith.addi %c0_i32, %c8_i32 : i32
    %c1_i32 = arith.constant 1 : i32
    scf.for %arg11 = %c0_i32 to %4 step %c1_i32  : i32 {
      %c1_i32_12 = arith.constant 1 : i32
      %5 = arith.muli %arg11, %c1_i32_12 : i32
      %c0_i32_13 = arith.constant 0 : i32
      %6 = arith.addi %c0_i32_13, %5 : i32
      %7 = arith.index_cast %6 : i32 to index
      %8 = memref.load %arg0[%7] : memref<8xi32, #tpu.memory_space<smem>>
      %9 = arith.index_cast %8 : i32 to index
      %c0_14 = arith.constant 0 : index
      %c0_15 = arith.constant 0 : index
      %10 = vector.load %arg1[%9, %c0_14, %c0_15] : memref<100x1x32xf32, #tpu.memory_space<vmem>>, vector<1x1x32xf32>
      %11 = vector.shape_cast %10 : vector<1x1x32xf32> to vector<1x32xf32>
      %c0_16 = arith.constant 0 : index
      %c0_17 = arith.constant 0 : index
      %c0_18 = arith.constant 0 : index
      %12 = vector.load %arg9[%c0_16, %c0_17, %c0_18] : memref<2x1x32xf32, #tpu.memory_space<vmem>>, vector<1x1x32xf32>
      %13 = vector.shape_cast %12 : vector<1x1x32xf32> to vector<1x32xf32>
      %c0_19 = arith.constant 0 : index
      %c0_20 = arith.constant 0 : index
      %c0_21 = arith.constant 0 : index
      %14 = vector.load %arg10[%c0_19, %c0_20, %c0_21] : memref<2x1x32xf32, #tpu.memory_space<vmem>>, vector<1x1x32xf32>
      %15 = vector.shape_cast %14 : vector<1x1x32xf32> to vector<1x32xf32>
      %16 = tpu.concatenate %11, %13 in 1 : vector<1x32xf32>, vector<1x32xf32> -> vector<1x64xf32>
      %c0_22 = arith.constant 0 : index
      %c0_23 = arith.constant 0 : index
      %c0_24 = arith.constant 0 : index
      %17 = vector.load %arg2[%c0_22, %c0_23, %c0_24] : memref<2x64x128xf32, #tpu.memory_space<vmem>>, vector<1x64x128xf32>
      %18 = vector.shape_cast %17 : vector<1x64x128xf32> to vector<64x128xf32>
      %cst = arith.constant dense<0.000000e+00> : vector<1x128xf32>
      %19 = tpu.matmul %16, %18, %cst {dimension_numbers = #tpu.dot_dimension_numbers<[1], [0], [0], [1], [0, 0, 1, 1], [], []>} : vector<1x64xf32>, vector<64x128xf32>, vector<1x128xf32> -> vector<1x128xf32>
      %c0_25 = arith.constant 0 : index
      %c0_26 = arith.constant 0 : index
      %c0_27 = arith.constant 0 : index
      %20 = vector.load %arg3[%c0_25, %c0_26, %c0_27] : memref<2x1x128xf32, #tpu.memory_space<vmem>>, vector<1x1x128xf32>
      %21 = vector.shape_cast %20 : vector<1x1x128xf32> to vector<1x128xf32>
      %22 = arith.addf %19, %21 : vector<1x128xf32>
      %23 = vector.extract_strided_slice %22 {offsets = [0, 0], sizes = [1, 32], strides = [1, 1]} : vector<1x128xf32> to vector<1x32xf32>
      %24 = arith.negf %23 : vector<1x32xf32>
      %25 = math.exp %24 : vector<1x32xf32>
      %cst_28 = arith.constant 1.000000e+00 : f32
      %26 = vector.broadcast %cst_28 : f32 to vector<1x32xf32>
      %27 = arith.addf %26, %25 : vector<1x32xf32>
      %28 = arith.divf %26, %27 : vector<1x32xf32>
      %29 = vector.extract_strided_slice %22 {offsets = [0, 32], sizes = [1, 32], strides = [1, 1]} : vector<1x128xf32> to vector<1x32xf32>
      %30 = arith.negf %29 : vector<1x32xf32>
      %31 = math.exp %30 : vector<1x32xf32>
      %cst_29 = arith.constant 1.000000e+00 : f32
      %32 = vector.broadcast %cst_29 : f32 to vector<1x32xf32>
      %33 = arith.addf %32, %31 : vector<1x32xf32>
      %34 = arith.divf %32, %33 : vector<1x32xf32>
      %35 = vector.extract_strided_slice %22 {offsets = [0, 64], sizes = [1, 32], strides = [1, 1]} : vector<1x128xf32> to vector<1x32xf32>
      %36 = math.tanh %35 : vector<1x32xf32>
      %37 = vector.extract_strided_slice %22 {offsets = [0, 96], sizes = [1, 32], strides = [1, 1]} : vector<1x128xf32> to vector<1x32xf32>
      %38 = arith.negf %37 : vector<1x32xf32>
      %39 = math.exp %38 : vector<1x32xf32>
      %cst_30 = arith.constant 1.000000e+00 : f32
      %40 = vector.broadcast %cst_30 : f32 to vector<1x32xf32>
      %41 = arith.addf %40, %39 : vector<1x32xf32>
      %42 = arith.divf %40, %41 : vector<1x32xf32>
      %43 = arith.mulf %34, %15 : vector<1x32xf32>
      %44 = arith.mulf %28, %36 : vector<1x32xf32>
      %45 = arith.addf %43, %44 : vector<1x32xf32>
      %46 = math.tanh %45 : vector<1x32xf32>
      %47 = arith.mulf %42, %46 : vector<1x32xf32>
      %c0_31 = arith.constant 0 : index
      %c0_32 = arith.constant 0 : index
      %c0_33 = arith.constant 0 : index
      %48 = vector.load %arg9[%c0_31, %c0_32, %c0_33] : memref<2x1x32xf32, #tpu.memory_space<vmem>>, vector<1x1x32xf32>
      %49 = vector.shape_cast %48 : vector<1x1x32xf32> to vector<1x32xf32>
      %50 = vector.shape_cast %47 : vector<1x32xf32> to vector<1x1x32xf32>
      tpu.vector_store %arg9[%c0_31, %c0_32, %c0_33], %50 {strides = array<i32>} : memref<2x1x32xf32, #tpu.memory_space<vmem>>, vector<1x1x32xf32>,
      %c0_34 = arith.constant 0 : index
      %c0_35 = arith.constant 0 : index
      %c0_36 = arith.constant 0 : index
      %51 = vector.load %arg10[%c0_34, %c0_35, %c0_36] : memref<2x1x32xf32, #tpu.memory_space<vmem>>, vector<1x1x32xf32>
      %52 = vector.shape_cast %51 : vector<1x1x32xf32> to vector<1x32xf32>
      %53 = vector.shape_cast %45 : vector<1x32xf32> to vector<1x1x32xf32>
      tpu.vector_store %arg10[%c0_34, %c0_35, %c0_36], %53 {strides = array<i32>} : memref<2x1x32xf32, #tpu.memory_space<vmem>>, vector<1x1x32xf32>,
      %c1 = arith.constant 1 : index
      %c0_37 = arith.constant 0 : index
      %c0_38 = arith.constant 0 : index
      %54 = vector.load %arg9[%c1, %c0_37, %c0_38] : memref<2x1x32xf32, #tpu.memory_space<vmem>>, vector<1x1x32xf32>
      %55 = vector.shape_cast %54 : vector<1x1x32xf32> to vector<1x32xf32>
      %c1_39 = arith.constant 1 : index
      %c0_40 = arith.constant 0 : index
      %c0_41 = arith.constant 0 : index
      %56 = vector.load %arg10[%c1_39, %c0_40, %c0_41] : memref<2x1x32xf32, #tpu.memory_space<vmem>>, vector<1x1x32xf32>
      %57 = vector.shape_cast %56 : vector<1x1x32xf32> to vector<1x32xf32>
      %58 = tpu.concatenate %47, %55 in 1 : vector<1x32xf32>, vector<1x32xf32> -> vector<1x64xf32>
      %c1_42 = arith.constant 1 : index
      %c0_43 = arith.constant 0 : index
      %c0_44 = arith.constant 0 : index
      %59 = vector.load %arg2[%c1_42, %c0_43, %c0_44] : memref<2x64x128xf32, #tpu.memory_space<vmem>>, vector<1x64x128xf32>
      %60 = vector.shape_cast %59 : vector<1x64x128xf32> to vector<64x128xf32>
      %cst_45 = arith.constant dense<0.000000e+00> : vector<1x128xf32>
      %61 = tpu.matmul %58, %60, %cst_45 {dimension_numbers = #tpu.dot_dimension_numbers<[1], [0], [0], [1], [0, 0, 1, 1], [], []>} : vector<1x64xf32>, vector<64x128xf32>, vector<1x128xf32> -> vector<1x128xf32>
      %c1_46 = arith.constant 1 : index
      %c0_47 = arith.constant 0 : index
      %c0_48 = arith.constant 0 : index
      %62 = vector.load %arg3[%c1_46, %c0_47, %c0_48] : memref<2x1x128xf32, #tpu.memory_space<vmem>>, vector<1x1x128xf32>
      %63 = vector.shape_cast %62 : vector<1x1x128xf32> to vector<1x128xf32>
      %64 = arith.addf %61, %63 : vector<1x128xf32>
      %65 = vector.extract_strided_slice %64 {offsets = [0, 0], sizes = [1, 32], strides = [1, 1]} : vector<1x128xf32> to vector<1x32xf32>
      %66 = arith.negf %65 : vector<1x32xf32>
      %67 = math.exp %66 : vector<1x32xf32>
      %cst_49 = arith.constant 1.000000e+00 : f32
      %68 = vector.broadcast %cst_49 : f32 to vector<1x32xf32>
      %69 = arith.addf %68, %67 : vector<1x32xf32>
      %70 = arith.divf %68, %69 : vector<1x32xf32>
      %71 = vector.extract_strided_slice %64 {offsets = [0, 32], sizes = [1, 32], strides = [1, 1]} : vector<1x128xf32> to vector<1x32xf32>
      %72 = arith.negf %71 : vector<1x32xf32>
      %73 = math.exp %72 : vector<1x32xf32>
      %cst_50 = arith.constant 1.000000e+00 : f32
      %74 = vector.broadcast %cst_50 : f32 to vector<1x32xf32>
      %75 = arith.addf %74, %73 : vector<1x32xf32>
      %76 = arith.divf %74, %75 : vector<1x32xf32>
      %77 = vector.extract_strided_slice %64 {offsets = [0, 64], sizes = [1, 32], strides = [1, 1]} : vector<1x128xf32> to vector<1x32xf32>
      %78 = math.tanh %77 : vector<1x32xf32>
      %79 = vector.extract_strided_slice %64 {offsets = [0, 96], sizes = [1, 32], strides = [1, 1]} : vector<1x128xf32> to vector<1x32xf32>
      %80 = arith.negf %79 : vector<1x32xf32>
      %81 = math.exp %80 : vector<1x32xf32>
      %cst_51 = arith.constant 1.000000e+00 : f32
      %82 = vector.broadcast %cst_51 : f32 to vector<1x32xf32>
      %83 = arith.addf %82, %81 : vector<1x32xf32>
      %84 = arith.divf %82, %83 : vector<1x32xf32>
      %85 = arith.mulf %76, %57 : vector<1x32xf32>
      %86 = arith.mulf %70, %78 : vector<1x32xf32>
      %87 = arith.addf %85, %86 : vector<1x32xf32>
      %88 = math.tanh %87 : vector<1x32xf32>
      %89 = arith.mulf %84, %88 : vector<1x32xf32>
      %c1_52 = arith.constant 1 : index
      %c0_53 = arith.constant 0 : index
      %c0_54 = arith.constant 0 : index
      %90 = vector.load %arg9[%c1_52, %c0_53, %c0_54] : memref<2x1x32xf32, #tpu.memory_space<vmem>>, vector<1x1x32xf32>
      %91 = vector.shape_cast %90 : vector<1x1x32xf32> to vector<1x32xf32>
      %92 = vector.shape_cast %89 : vector<1x32xf32> to vector<1x1x32xf32>
      tpu.vector_store %arg9[%c1_52, %c0_53, %c0_54], %92 {strides = array<i32>} : memref<2x1x32xf32, #tpu.memory_space<vmem>>, vector<1x1x32xf32>,
      %c1_55 = arith.constant 1 : index
      %c0_56 = arith.constant 0 : index
      %c0_57 = arith.constant 0 : index
      %93 = vector.load %arg10[%c1_55, %c0_56, %c0_57] : memref<2x1x32xf32, #tpu.memory_space<vmem>>, vector<1x1x32xf32>
      %94 = vector.shape_cast %93 : vector<1x1x32xf32> to vector<1x32xf32>
      %95 = vector.shape_cast %87 : vector<1x32xf32> to vector<1x1x32xf32>
      tpu.vector_store %arg10[%c1_55, %c0_56, %c0_57], %95 {strides = array<i32>} : memref<2x1x32xf32, #tpu.memory_space<vmem>>, vector<1x1x32xf32>,
      %c0_58 = arith.constant 0 : index
      %c0_59 = arith.constant 0 : index
      %96 = vector.load %arg4[%c0_58, %c0_59] : memref<32x128xf32, #tpu.memory_space<vmem>>, vector<32x128xf32>
      %cst_60 = arith.constant dense<0.000000e+00> : vector<1x128xf32>
      %97 = tpu.matmul %89, %96, %cst_60 {dimension_numbers = #tpu.dot_dimension_numbers<[1], [0], [0], [1], [0, 0, 1, 1], [], []>} : vector<1x32xf32>, vector<32x128xf32>, vector<1x128xf32> -> vector<1x128xf32>
      %c0_61 = arith.constant 0 : index
      %c0_62 = arith.constant 0 : index
      %98 = vector.load %arg5[%c0_61, %c0_62] : memref<1x128xf32, #tpu.memory_space<vmem>>, vector<1x128xf32>
      %99 = arith.addf %97, %98 : vector<1x128xf32>
      %100 = arith.index_cast %6 : i32 to index
      %c0_63 = arith.constant 0 : index
      %c0_64 = arith.constant 0 : index
      %101 = vector.load %arg8[%100, %c0_63, %c0_64] : memref<8x1x128xf32, #tpu.memory_space<vmem>>, vector<1x1x128xf32>
      %102 = vector.shape_cast %101 : vector<1x1x128xf32> to vector<1x128xf32>
      %103 = vector.shape_cast %99 : vector<1x128xf32> to vector<1x1x128xf32>
      tpu.vector_store %arg8[%100, %c0_63, %c0_64], %103 {strides = array<i32>} : memref<8x1x128xf32, #tpu.memory_space<vmem>>, vector<1x1x128xf32>,
    }
    %c8_i32_11 = arith.constant 8 : i32
    return
  }
}

</mosaic_0001>

<llo_original>
// kernel: tpu_custom_call.1
$region0: #{tpu_custom_call.1}
  #allocation0 [shape = 'u32[]', space=smem, size = 0x4, offset = 0x4, fixed_abs, tag = 'smem constant byte address 0x4 - core index']
  #allocation1 [shape = 'u32[72,128]{1,0:T(1,128)}', space=vmem, size = 0x9000, scoped, tag = 'internal scratch']
  %s0 = inlined_call_operand.vmem [shape: s32[8], index: 0, kind: input, shape index: {}]
  %s1 = inlined_call_operand.vmem [shape: f32[100,1,32], index: 1, kind: input, shape index: {}]
  %s2 = inlined_call_operand.vmem [shape: f32[2,64,128], index: 2, kind: input, shape index: {}]
  %s3 = inlined_call_operand.vmem [shape: f32[2,1,128], index: 3, kind: input, shape index: {}]
  %s4 = inlined_call_operand.hbm [shape: f32[32,128], index: 4, kind: input, shape index: {}]
  %s5 = inlined_call_operand.hbm [shape: f32[1,128], index: 5, kind: input, shape index: {}]
  %s6 = inlined_call_operand.vmem [shape: f32[2,1,32], index: 6, kind: input, shape index: {}]
  %s7 = inlined_call_operand.vmem [shape: f32[2,1,32], index: 7, kind: input, shape index: {}]
  %s8 = inlined_call_operand.hbm [shape: f32[8,1,128], index: 8, kind: output, shape index: {0}]
  %s9 = inlined_call_operand.hbm [shape: f32[2,1,32], index: 9, kind: output, shape index: {1}]
  %s10 = inlined_call_operand.hbm [shape: f32[2,1,32], index: 10, kind: output, shape index: {2}]
  %11 = xla_tuple %s8, %s9, %s10
  %s12 = sld [smem:[#allocation0]]
  $region77: #{tpu_custom_call.1} parent=0
    _
  %s14 = ssub.s32 1, %s12
  %s15 = scalar_select 0, %s14, %s12
  $region1: #{tpu_custom_call.1} parent=0
    #allocation2 [shape = 'u8[512]{0}', space=smem, size = 0x200, scoped, tag = 'input window, operand 0, single buffered']
    #allocation3 [shape = 's32[1]{0}', space=sflag, size = 0x4, scoped, tag = 'scoped memory for tpu_custom_call.1']
    #allocation4 [shape = 's32[1]{0}', space=sflag, size = 0x4, scoped, tag = 'scoped memory for tpu_custom_call.1']
    #allocation5 [shape = 's32[1]{0}', space=sflag, size = 0x4, scoped, tag = 'scoped memory for tpu_custom_call.1']
    #allocation6 [shape = 'u8[16384]{0}', space=vmem, size = 0x4000, scoped, tag = 'input window, operand 4, single buffered']
    #allocation7 [shape = 'u8[512]{0}', space=vmem, size = 0x400, scoped, tag = 'input window, operand 5, single buffered']
    #allocation8 [shape = 's32[1]{0}', space=sflag, size = 0x4, scoped, tag = 'scoped memory for tpu_custom_call.1']
    #allocation9 [shape = 'u8[4096]{0}', space=vmem, size = 0x1000, scoped, tag = 'output window, operand 0, single buffered']
    #allocation10 [shape = 'u8[1024]{0}', space=vmem, size = 0x400, scoped, tag = 'output window, operand 1, single buffered']
    #allocation11 [shape = 's32[1]{0}', space=sflag, size = 0x4, scoped, tag = 'scoped memory for tpu_custom_call.1']
    #allocation12 [shape = 'u8[1024]{0}', space=vmem, size = 0x400, scoped, tag = 'output window, operand 2, single buffered']
    %16 = vsyncpa [#allocation5], 0
    %17 = vsyncpa [#allocation3], 0
    %18 = vsyncpa [#allocation8], 0
    %19 = vsyncpa [#allocation4], 0
    %20 = vsyncpa [#allocation11], 0
    // Predicated region
    $region2: #{tpu_custom_call.1} parent=1 // pred_check
      _
    $region3: #{tpu_custom_call.1} parent=1 // pred_check_branch
      %22 = sbr.rel (0) target = $region5
    $region4: #{tpu_custom_call.1} parent=1 // pred_region
      %24 = vsyncadd [#allocation5], 0
      %s26 = sshll.u32 %s0, 4
      %s27 = int_to_ptr.vmem [resolvable:$true] %s26
      %29 = dma.vmem_to_smem %s27, 16, [#allocation2], [#allocation5]
    $region5: #{tpu_custom_call.1} parent=1 // pred_fallthru
      _
    // Predicated region
    $region6: #{tpu_custom_call.1} parent=1 // pred_check
      _
    $region7: #{tpu_custom_call.1} parent=1 // pred_check_branch
      %31 = sbr.rel (0) target = $region9
    $region8: #{tpu_custom_call.1} parent=1 // pred_region
      _
    $region9: #{tpu_custom_call.1} parent=1 // pred_fallthru
      _
    // Predicated region
    $region10: #{tpu_custom_call.1} parent=1 // pred_check
      _
    $region11: #{tpu_custom_call.1} parent=1 // pred_check_branch
      %33 = sbr.rel (0) target = $region13
    $region12: #{tpu_custom_call.1} parent=1 // pred_region
      _
    $region13: #{tpu_custom_call.1} parent=1 // pred_fallthru
      _
    // Predicated region
    $region14: #{tpu_custom_call.1} parent=1 // pred_check
      _
    $region15: #{tpu_custom_call.1} parent=1 // pred_check_branch
      %35 = sbr.rel (0) target = $region17
    $region16: #{tpu_custom_call.1} parent=1 // pred_region
      _
    $region17: #{tpu_custom_call.1} parent=1 // pred_fallthru
      _
    // Predicated region
    $region18: #{tpu_custom_call.1} parent=1 // pred_check
      _
    $region19: #{tpu_custom_call.1} parent=1 // pred_check_branch
      %37 = sbr.rel (0) target = $region21
    $region20: #{tpu_custom_call.1} parent=1 // pred_region
      %39 = vsyncadd [#allocation3], 0
      %s40 = sshll.u32 %s4, 4
      %s41 = int_to_ptr.hbm [resolvable:$true] %s40
      %s42 = sshll.u32 [#allocation6], 4
      %s43 = int_to_ptr.vmem [resolvable:$true] %s42
      %48 = dma.hbm_to_vmem [thread:$0]  %s41, 512, %s43, [#allocation3], 128, 128, 8
    $region21: #{tpu_custom_call.1} parent=1 // pred_fallthru
      _
    // Predicated region
    $region22: #{tpu_custom_call.1} parent=1 // pred_check
      _
    $region23: #{tpu_custom_call.1} parent=1 // pred_check_branch
      %50 = sbr.rel (0) target = $region25
    $region24: #{tpu_custom_call.1} parent=1 // pred_region
      %52 = vsyncadd [#allocation8], 0
      %s54 = sshll.u32 %s5, 4
      %s55 = int_to_ptr.hbm [resolvable:$true] %s54
      %s56 = sshll.u32 [#allocation7], 4
      %s57 = int_to_ptr.vmem [resolvable:$true] %s56
      %59 = dma.hbm_to_vmem [thread:$0]  %s55, 16, %s57, [#allocation8]
    $region25: #{tpu_custom_call.1} parent=1 // pred_fallthru
      _
    // Predicated region
    $region26: #{tpu_custom_call.1} parent=1 // pred_check
      _
    $region27: #{tpu_custom_call.1} parent=1 // pred_check_branch
      %61 = sbr.rel (0) target = $region29
    $region28: #{tpu_custom_call.1} parent=1 // pred_region
      _
    $region29: #{tpu_custom_call.1} parent=1 // pred_fallthru
      _
    // Predicated region
    $region30: #{tpu_custom_call.1} parent=1 // pred_check
      _
    $region31: #{tpu_custom_call.1} parent=1 // pred_check_branch
      %63 = sbr.rel (0) target = $region33
    $region32: #{tpu_custom_call.1} parent=1 // pred_region
      _
    $region33: #{tpu_custom_call.1} parent=1 // pred_fallthru
      _
    // Predicated region
    $region34: #{tpu_custom_call.1} parent=1 // pred_check
      _
    $region35: #{tpu_custom_call.1} parent=1 // pred_check_branch
      %65 = sbr.rel (0) target = $region37
    $region36: #{tpu_custom_call.1} parent=1 // pred_region
      %67 = dma.done [#allocation5], 16
    $region37: #{tpu_custom_call.1} parent=1 // pred_fallthru
      _
    // Predicated region
    $region38: #{tpu_custom_call.1} parent=1 // pred_check
      _
    $region39: #{tpu_custom_call.1} parent=1 // pred_check_branch
      %69 = sbr.rel (0) target = $region41
    $region40: #{tpu_custom_call.1} parent=1 // pred_region
      %71 = dma.done [#allocation3], 512
    $region41: #{tpu_custom_call.1} parent=1 // pred_fallthru
      _
    // Predicated region
    $region42: #{tpu_custom_call.1} parent=1 // pred_check
      _
    $region43: #{tpu_custom_call.1} parent=1 // pred_check_branch
      %73 = sbr.rel (0) target = $region45
    $region44: #{tpu_custom_call.1} parent=1 // pred_region
      %75 = dma.done [#allocation8], 16
    $region45: #{tpu_custom_call.1} parent=1 // pred_fallthru
      _
    %76 = sfence
    %v77 = vld [vmem:[%s6] sm:$0x1]
    %v78 = vld [vmem:[%s6 + $0x1] sm:$0x1]
    %vm79 = vcmask 253952
    %80 = vst.msk [vmem:[#allocation10] sm:$0x1] %vm79, %v77
    %81 = vst.msk [vmem:[#allocation10 + $0x1] sm:$0x1] %vm79, %v78
    %v82 = vld [vmem:[%s7] sm:$0x1]
    %v83 = vld [vmem:[%s7 + $0x1] sm:$0x1]
    %84 = vst.msk [vmem:[#allocation12] sm:$0x1] %vm79, %v82
    %85 = vst.msk [vmem:[#allocation12 + $0x1] sm:$0x1] %vm79, %v83
    loop: start=0, step=1, limit=8
    $region46: #{tpu_custom_call.1} parent=1 // loop_pre_header
      _
    $region47: #{tpu_custom_call.1} parent=1 // loop_header
      %s87 = sphi 0, %s91
      %p88 = scmp.ge.s32.totalorder %s87, 8
    $region48: #{tpu_custom_call.1} parent=1 // loop_header_branch
      %90 = sbr.rel (%p88) target = $region52
    $region49: #{tpu_custom_call.1} parent=1 // loop_body
      %s92 = sld [smem:[#allocation2 + %s87]]
      %s93 = scalar_lea.vmem %s1, %s92
      %v94 = vld [vmem:[%s93] sm:$0x1]
      %v95 = vld [vmem:[#allocation10] sm:$0x1]
      %v96 = vld [vmem:[#allocation12] sm:$0x1]
      %v98 = vperm.slane %v95, 0
      %99 = vrot.lane.b32.xlu0 %v98, 32
      %v100 = vpop.permute.xlu0 %99
      %vm102 = vcmask 261120
      %v103 = vsel %vm102, %v94, %v100
      %v104 = vld [vmem:[%s2] sm:$0xff]
      %v105 = vld [vmem:[%s2 + $0x8] sm:$0xff]
      %v106 = vld [vmem:[%s2 + $0x10] sm:$0xff]
      %v107 = vld [vmem:[%s2 + $0x18] sm:$0xff]
      %v108 = vld [vmem:[%s2 + $0x20] sm:$0xff]
      %v109 = vld [vmem:[%s2 + $0x28] sm:$0xff]
      %v110 = vld [vmem:[%s2 + $0x30] sm:$0xff]
      %v111 = vld [vmem:[%s2 + $0x38] sm:$0xff]
      %v112 = vld [vmem:[%s3] sm:$0x1]
      %vm113 = vcmask 523264
      %v115 = vsel %vm113, %v103, 0
      %117 = vmatpush.msra.mxu0 0.0
      %118 = vmatpush.msra.mxu0 0.0
      %119 = vmatpush.msra.mxu0 0.0
      %120 = vmatpush.msra.mxu0 0.0
      %121 = vmatpush.msra.mxu0 0.0
      %122 = vmatpush.msra.mxu0 0.0
      %123 = vmatpush.msra.mxu0 0.0
      %124 = vmatpush.msra.mxu0 0.0
      %125 = vmatpush.msra.mxu0 %v111
      %126 = vmatpush.msra.mxu0 %v110
      %127 = vmatpush.msra.mxu0 %v109
      %128 = vmatpush.msra.mxu0 %v108
      %129 = vmatpush.msra.mxu0 %v107
      %130 = vmatpush.msra.mxu0 %v106
      %131 = vmatpush.msra.mxu0 %v105
      %132 = vmatpush.msra.mxu0 %v104
      %133 = vmatmul.f32.gmra.mxu0 %v115
      %v134 = vpop.f32.mrf.mxu0
      %v135 = vadd.f32 %v112, %v134
      %136 = vdwg.mxu0
      %v137 = vxor.u32 %v135, 2147483648
      %v138 = vmul.f32 %v137, 1.442695
      %v139 = vpow.pop %v138
      %v140 = vadd.f32 %v139, 1.0
      %v141 = vrcp.pop %v140
      %v142 = vmul.f32 %v140, %v141
      %v143 = vsub.f32 1.0, %v142
      %v144 = vmul.f32 %v141, %v143
      %v145 = vadd.f32 %v141, %v144
      %vm146 = vweird.f32 %v140
      %vm147 = vweird.f32 %v141
      %vm148 = vmor %vm146, %vm147
      %v149 = vsel %vm148, %v141, %v145
      %v150 = vand.u32 2147483647, %v140
      %vm151 = vcmp.eq.f32.partialorder %v150, 8.507059e+37
      %v152 = vand.u32 %v140, 2147483648
      %v153 = vor.u32 1.1754944e-38, %v152
      %v154 = vsel %vm151, %v153, %v149
      %v155 = vmul.f32 1.0, %v154
      %v156 = vtanh.pop %v135
      %v158 = vperm.slane %v96, 0
      %159 = vrot.lane.b32.xlu0 %v158, 32
      %v160 = vpop.permute.xlu0 %159
      %v162 = vmul.f32 %v155, %v160
      %164 = vrot.lane.b32.xlu0 %v156, 64
      %v165 = vpop.permute.xlu0 %164
      %v167 = vmul.f32 %v155, %v165
      %169 = vrot.lane.b32.xlu0 %v167, 32
      %v170 = vpop.permute.xlu0 %169
      %v172 = vadd.f32 %v162, %v170
      %v173 = vtanh.pop %v172
      %175 = vrot.lane.b32.xlu0 %v173, 64
      %v176 = vpop.permute.xlu0 %175
      %v178 = vmul.f32 %v155, %v176
      %180 = vrot.lane.b32.xlu0 %v178, 32
      %v181 = vpop.permute.xlu0 %180
      %183 = vst.msk [vmem:[#allocation10] sm:$0x1] %vm79, %v181
      %185 = vrot.lane.b32.xlu0 %v172, 96
      %v186 = vpop.permute.xlu0 %185
      %188 = vst.msk [vmem:[#allocation12] sm:$0x1] %vm79, %v186
      %s189 = scalar_lea.vmem [#allocation10], 1
      %v190 = vld [vmem:[%s189] sm:$0x1]
      %s191 = scalar_lea.vmem [#allocation12], 1
      %v192 = vld [vmem:[%s191] sm:$0x1]
      %v194 = vperm.slane %v190, 0
      %195 = vrot.lane.b32.xlu0 %v194, 32
      %v196 = vpop.permute.xlu0 %195
      %v198 = vsel %vm102, %v181, %v196
      %s199 = scalar_lea.vmem %s2, 64
      %v200 = vld [vmem:[%s199] sm:$0xff]
      %v201 = vld [vmem:[%s199 + $0x8] sm:$0xff]
      %v202 = vld [vmem:[%s199 + $0x10] sm:$0xff]
      %v203 = vld [vmem:[%s199 + $0x18] sm:$0xff]
      %v204 = vld [vmem:[%s199 + $0x20] sm:$0xff]
      %v205 = vld [vmem:[%s199 + $0x28] sm:$0xff]
      %v206 = vld [vmem:[%s199 + $0x30] sm:$0xff]
      %v207 = vld [vmem:[%s199 + $0x38] sm:$0xff]
      %s208 = scalar_lea.vmem %s3, 1
      %v209 = vld [vmem:[%s208] sm:$0x1]
      %v211 = vsel %vm113, %v198, 0
      %213 = vmatpush.msra.mxu0 0.0
      %214 = vmatpush.msra.mxu0 0.0
      %215 = vmatpush.msra.mxu0 0.0
      %216 = vmatpush.msra.mxu0 0.0
      %217 = vmatpush.msra.mxu0 0.0
      %218 = vmatpush.msra.mxu0 0.0
      %219 = vmatpush.msra.mxu0 0.0
      %220 = vmatpush.msra.mxu0 0.0
      %221 = vmatpush.msra.mxu0 %v207
      %222 = vmatpush.msra.mxu0 %v206
      %223 = vmatpush.msra.mxu0 %v205
      %224 = vmatpush.msra.mxu0 %v204
      %225 = vmatpush.msra.mxu0 %v203
      %226 = vmatpush.msra.mxu0 %v202
      %227 = vmatpush.msra.mxu0 %v201
      %228 = vmatpush.msra.mxu0 %v200
      %229 = vmatmul.f32.gmra.mxu0 %v211
      %v230 = vpop.f32.mrf.mxu0
      %v231 = vadd.f32 %v209, %v230
      %232 = vdwg.mxu0
      %v233 = vxor.u32 %v231, 2147483648
      %v234 = vmul.f32 %v233, 1.442695
      %v235 = vpow.pop %v234
      %v236 = vadd.f32 %v235, 1.0
      %v237 = vrcp.pop %v236
      %v238 = vmul.f32 %v236, %v237
      %v239 = vsub.f32 1.0, %v238
      %v240 = vmul.f32 %v237, %v239
      %v241 = vadd.f32 %v237, %v240
      %vm242 = vweird.f32 %v236
      %vm243 = vweird.f32 %v237
      %vm244 = vmor %vm242, %vm243
      %v245 = vsel %vm244, %v237, %v241
      %v246 = vand.u32 2147483647, %v236
      %vm247 = vcmp.eq.f32.partialorder %v246, 8.507059e+37
      %v248 = vand.u32 %v236, 2147483648
      %v249 = vor.u32 1.1754944e-38, %v248
      %v250 = vsel %vm247, %v249, %v245
      %v251 = vmul.f32 1.0, %v250
      %v252 = vtanh.pop %v231
      %v254 = vperm.slane %v192, 0
      %255 = vrot.lane.b32.xlu0 %v254, 32
      %v256 = vpop.permute.xlu0 %255
      %v258 = vmul.f32 %v251, %v256
      %260 = vrot.lane.b32.xlu0 %v252, 64
      %v261 = vpop.permute.xlu0 %260
      %v263 = vmul.f32 %v251, %v261
      %265 = vrot.lane.b32.xlu0 %v263, 32
      %v266 = vpop.permute.xlu0 %265
      %v268 = vadd.f32 %v258, %v266
      %v269 = vtanh.pop %v268
      %271 = vrot.lane.b32.xlu0 %v269, 64
      %v272 = vpop.permute.xlu0 %271
      %v274 = vmul.f32 %v251, %v272
      %276 = vrot.lane.b32.xlu0 %v274, 32
      %v277 = vpop.permute.xlu0 %276
      %279 = vst.msk [vmem:[%s189] sm:$0x1] %vm79, %v277
      %281 = vrot.lane.b32.xlu0 %v268, 96
      %v282 = vpop.permute.xlu0 %281
      %284 = vst.msk [vmem:[%s191] sm:$0x1] %vm79, %v282
      %v285 = vld [vmem:[#allocation6] sm:$0xff]
      %v286 = vld [vmem:[#allocation6 + $0x8] sm:$0xff]
      %v287 = vld [vmem:[#allocation6 + $0x10] sm:$0xff]
      %v288 = vld [vmem:[#allocation6 + $0x18] sm:$0xff]
      %v289 = vld [vmem:[#allocation7] sm:$0x1]
      %v290 = vsel %vm102, %v277, 0
      %292 = vmatpush.msra.mxu0 0.0
      %293 = vmatpush.msra.mxu0 0.0
      %294 = vmatpush.msra.mxu0 0.0
      %295 = vmatpush.msra.mxu0 0.0
      %296 = vmatpush.msra.mxu0 0.0
      %297 = vmatpush.msra.mxu0 0.0
      %298 = vmatpush.msra.mxu0 0.0
      %299 = vmatpush.msra.mxu0 0.0
      %300 = vmatpush.msra.mxu0 0.0
      %301 = vmatpush.msra.mxu0 0.0
      %302 = vmatpush.msra.mxu0 0.0
      %303 = vmatpush.msra.mxu0 0.0
      %304 = vmatpush.msra.mxu0 %v288
      %305 = vmatpush.msra.mxu0 %v287
      %306 = vmatpush.msra.mxu0 %v286
      %307 = vmatpush.msra.mxu0 %v285
      %308 = vmatmul.f32.gmra.mxu0 %v290
      %v309 = vpop.f32.mrf.mxu0
      %v310 = vadd.f32 %v289, %v309
      %311 = vdwg.mxu0
      %s312 = scalar_lea.vmem [#allocation9], %s87
      %313 = vst [vmem:[%s312] sm:$0x1] %v310
    $region50: #{tpu_custom_call.1} parent=1 // loop_footer
      %s91 = sadd.s32 1, %s87
    $region51: #{tpu_custom_call.1} parent=1 // loop_footer_branch
      %86 = sbr.rel target = $region47
    $region52: #{tpu_custom_call.1} parent=1 // loop_exit
      _
    // Predicated region
    $region53: #{tpu_custom_call.1} parent=1 // pred_check
      _
    $region54: #{tpu_custom_call.1} parent=1 // pred_check_branch
      %315 = sbr.rel (0) target = $region56
    $region55: #{tpu_custom_call.1} parent=1 // pred_region
      %317 = vsyncadd [#allocation4], 0
      %s318 = sshll.u32 [#allocation9], 4
      %s319 = int_to_ptr.vmem [resolvable:$true] %s318
      %s320 = sshll.u32 %s8, 4
      %s321 = int_to_ptr.hbm [resolvable:$true] %s320
      %326 = dma.vmem_to_hbm [thread:$0]  %s319, 128, %s321, [#allocation4], 16, 16, 1
    $region56: #{tpu_custom_call.1} parent=1 // pred_fallthru
      _
    // Predicated region
    $region57: #{tpu_custom_call.1} parent=1 // pred_check
      _
    $region58: #{tpu_custom_call.1} parent=1 // pred_check_branch
      %328 = sbr.rel (0) target = $region60
    $region59: #{tpu_custom_call.1} parent=1 // pred_region
      %330 = vsyncadd [#allocation11], 0
      %s331 = sshll.u32 [#allocation10], 4
      %s332 = int_to_ptr.vmem [resolvable:$true] %s331
      %s333 = sshll.u32 %s9, 4
      %s334 = int_to_ptr.hbm [resolvable:$true] %s333
      %339 = dma.vmem_to_hbm [thread:$0]  %s332, 32, %s334, [#allocation11], 16, 16, 1
    $region60: #{tpu_custom_call.1} parent=1 // pred_fallthru
      _
    // Predicated region
    $region61: #{tpu_custom_call.1} parent=1 // pred_check
      _
    $region62: #{tpu_custom_call.1} parent=1 // pred_check_branch
      %341 = sbr.rel (0) target = $region64
    $region63: #{tpu_custom_call.1} parent=1 // pred_region
      %343 = vsyncadd [#allocation11], 0
      %s344 = sshll.u32 [#allocation12], 4
      %s345 = int_to_ptr.vmem [resolvable:$true] %s344
      %s346 = sshll.u32 %s10, 4
      %s347 = int_to_ptr.hbm [resolvable:$true] %s346
      %352 = dma.vmem_to_hbm [thread:$0]  %s345, 32, %s347, [#allocation11], 16, 16, 1
    $region64: #{tpu_custom_call.1} parent=1 // pred_fallthru
      _
    // Predicated region
    $region65: #{tpu_custom_call.1} parent=1 // pred_check
      _
    $region66: #{tpu_custom_call.1} parent=1 // pred_check_branch
      %354 = sbr.rel (0) target = $region68
    $region67: #{tpu_custom_call.1} parent=1 // pred_region
      %356 = dma.done [#allocation4], 128
    $region68: #{tpu_custom_call.1} parent=1 // pred_fallthru
      _
    // Predicated region
    $region69: #{tpu_custom_call.1} parent=1 // pred_check
      _
    $region70: #{tpu_custom_call.1} parent=1 // pred_check_branch
      %358 = sbr.rel (0) target = $region72
    $region71: #{tpu_custom_call.1} parent=1 // pred_region
      %360 = dma.done [#allocation11], 32
    $region72: #{tpu_custom_call.1} parent=1 // pred_fallthru
      _
    // Predicated region
    $region73: #{tpu_custom_call.1} parent=1 // pred_check
      _
    $region74: #{tpu_custom_call.1} parent=1 // pred_check_branch
      %362 = sbr.rel (0) target = $region76
    $region75: #{tpu_custom_call.1} parent=1 // pred_region
      %364 = dma.done [#allocation11], 32
    $region76: #{tpu_custom_call.1} parent=1 // pred_fallthru
      _
    %365 = vsyncpa [#allocation3], 1
    %366 = vsyncpa [#allocation8], 1
    %367 = vsyncpa [#allocation4], 1
    %368 = vsyncpa [#allocation11], 1
    %369 = vsyncpa [#allocation5], 1

</llo_original>
